<compile_context>
chip_gen: v6e
topology: v6e:2x2x1
jax: 0.10.0
libtpu: 0.0.40
codegen_flags: <defaults>
</compile_context>

<pallas_src>
import functools
import math

import jax
import jax.numpy as jnp
from jax import lax
from jax.experimental import pallas as pl
from jax.experimental.pallas import tpu as pltpu

_EPS = 1e-5


def _residual_kernel(use_1x1conv, h, cout, inv_cnt,
                     x_ref, m1_ref, m2_ref, g1_ref, be1_ref, g2_ref, be2_ref,
                     *rest):
    if use_1x1conv:
        b3_ref, out_ref = rest
    else:
        (out_ref,) = rest

    nh = x_ref.shape[0]          # N*H rows (sublane axis)
    wcout = out_ref.shape[1]     # W*Cout lanes

    # Per-row boundary masks for the height halo: a rolled above/below row is valid
    # only when the output row is not the first/last row of its image.  The same
    # masks also zero the cross-image and wrap-around rows introduced by the roll.
    row = lax.broadcasted_iota(jnp.int32, (nh, 1), 0) % h
    not_top = (row != 0).astype(jnp.float32)
    not_bot = (row != h - 1).astype(jnp.float32)

    def halo_cat(v):
        # v: (NH, K) f32 -> (NH, 3K) bf16 = [row above | row | row below].
        # Sublane rolls run on the XLU; replaces the old (NH,NH) selector matmuls.
        above = pltpu.roll(v, 1, axis=0) * not_top
        below = pltpu.roll(v, nh - 1, axis=0) * not_bot      # roll by -1
        return jnp.concatenate([above, v, below], axis=1).astype(jnp.bfloat16)

    def channel_sum(v):
        # Exact f32 per-channel sum over (N, H, W), broadcast back to every lane:
        # sublane reduce, then a log2(W) lane roll-add tree (channels repeat every
        # `cout` lanes).  Replaces the f32 pool matmuls — keeps the MXU free.
        s = jnp.sum(v, axis=0, keepdims=True)                # (1, W*C) f32
        shift = cout
        while shift < wcout:
            s = s + pltpu.roll(s, shift, axis=1)
            shift *= 2
        return s

    def batchnorm(y, g_ref, be_ref):
        # Training-mode BN: per-channel batch stats over (N, H, W), biased variance.
        mean = channel_sum(y) * inv_cnt
        cen = y - mean
        var = channel_sum(cen * cen) * inv_cnt
        return cen * (g_ref[...] * lax.rsqrt(var + _EPS)) + be_ref[...]

    xf = x_ref[...].astype(jnp.float32)                      # (NH, W*Cin) f32

    # conv1: single K = 3*W*Cin bf16 matmul (dy taps folded).  With use_1x1conv the
    # 1x1 projection is fused as extra output lanes (N = 2*W*Cout).
    r1 = jnp.dot(halo_cat(xf), m1_ref[...], preferred_element_type=jnp.float32)
    if use_1x1conv:
        y = r1[:, :wcout]
        shortcut = r1[:, wcout:] + b3_ref[...]
    else:
        y = r1
        shortcut = xf                                        # identity (Cin == Cout)

    # bn1 -> relu (conv biases folded away: cancelled by BN mean subtraction).
    y = jnp.maximum(batchnorm(y, g1_ref, be1_ref), 0.0)

    # conv2: single K = 3*W*Cout bf16 matmul -> bn2.
    y2 = jnp.dot(halo_cat(y), m2_ref[...], preferred_element_type=jnp.float32)
    y2 = batchnorm(y2, g2_ref, be2_ref)

    out_ref[...] = jnp.maximum(y2 + shortcut, 0.0).astype(out_ref.dtype)


def _band_mats_stacked(w_hwio, width):
    """(3,3,Cin,Cout) HWIO weights -> stacked banded matrix (3*W*Cin, W*Cout).

    Block row dy acts on the [above | center | below] lane-concatenated lhs; each
    block folds the three dx taps AND the width zero-padding into the weights.
    """
    kh, kw, cin, cout = w_hwio.shape
    blocks = []
    for dy in range(kh):
        m = jnp.zeros((width * cin, width * cout), jnp.float32)
        for dx in range(kw):
            band = jnp.eye(width, width, k=-(dx - 1), dtype=jnp.float32)
            m = m + jnp.kron(band, w_hwio[dy, dx].astype(jnp.float32))
        blocks.append(m)
    return jnp.concatenate(blocks, axis=0)                   # (3*W*Cin, W*Cout) f32


def residual_forward(x_nchw, params, *, use_1x1conv=False, strides=1):
    """Runs the Residual block. Input/output are NCHW like the PyTorch module."""
    if strides != 1:
        # TODO(synk): strided conv1/conv3 (strides > 1) not implemented in-kernel.
        raise NotImplementedError("only strides=1 is implemented")

    n, cin, h, w = x_nchw.shape
    cout = params["w1"].shape[-1]
    if not use_1x1conv and cin != cout:
        raise ValueError("identity shortcut requires input_channels == num_channels")
    if w & (w - 1):
        # TODO(synk): non-power-of-two widths need a different BN lane reduction.
        raise NotImplementedError("width must be a power of two for the roll-add BN")

    # Pad Cin so the x-slab lane width W*Cin is a full multiple of 128 (unmasked
    # vld/vst, 128-aligned lane concat, better MXU K); zero weight rows keep it exact.
    quant = 128 // math.gcd(w, 128)
    cin_p = -(-cin // quant) * quant
    if cin_p != cin and not use_1x1conv:
        # TODO(synk): identity shortcut with a channel-padded slab would need a lane
        # de-interleave; not needed for the tested shapes.
        raise NotImplementedError("identity shortcut requires W*Cin % 128 == 0")

    w1 = params["w1"]
    w3 = params.get("w3")
    if cin_p != cin:
        pad = cin_p - cin
        w1 = jnp.pad(w1, ((0, 0), (0, 0), (0, pad), (0, 0)))
        if use_1x1conv:
            w3 = jnp.pad(w3, ((0, pad), (0, 0)))

    # NCHW -> lane-dense bf16 slab (N*H, W*Cin_p), channels fastest on the lane axis.
    x_nhwc = jnp.transpose(x_nchw, (0, 2, 3, 1)).astype(jnp.float32)
    if cin_p != cin:
        x_nhwc = jnp.pad(x_nhwc, ((0, 0), (0, 0), (0, 0), (0, cin_p - cin)))
    x_slab = x_nhwc.reshape(n * h, w * cin_p).astype(jnp.bfloat16)

    # Weight-derived constants (rebuilt only when the weights change in practice).
    m1 = _band_mats_stacked(w1, w)                           # (3*W*Cin_p, W*Cout)
    m2 = _band_mats_stacked(params["w2"], w)                 # (3*W*Cout,  W*Cout)
    if use_1x1conv:
        # Fuse the 1x1 projection into conv1's matmul as extra output lanes
        # (N = 2*W*Cout): only the center block of the stacked lhs hits it.
        m3 = jnp.kron(jnp.eye(w, dtype=jnp.float32), w3.astype(jnp.float32))
        z = jnp.zeros_like(m3)
        m1 = jnp.concatenate([m1, jnp.concatenate([z, m3, z], axis=0)], axis=1)
    m1 = m1.astype(jnp.bfloat16)
    m2 = m2.astype(jnp.bfloat16)

    def tile_lane(v):
        return jnp.tile(jnp.asarray(v, jnp.float32).reshape(1, cout), (1, w))

    g1l, be1l = tile_lane(params["g1"]), tile_lane(params["be1"])
    g2l, be2l = tile_lane(params["g2"]), tile_lane(params["be2"])
    # NOTE: params["b1"], params["b2"] are intentionally unused: a per-channel bias
    # before training-mode BatchNorm is cancelled exactly by the mean subtraction.

    inputs = [x_slab, m1, m2, g1l, be1l, g2l, be2l]
    if use_1x1conv:
        inputs.append(tile_lane(params["b3"]))

    out_slab = pl.pallas_call(
        functools.partial(_residual_kernel, use_1x1conv, h, cout,
                          1.0 / float(n * h * w)),
        out_shape=jax.ShapeDtypeStruct((n * h, w * cout), jnp.float32),
        in_specs=[pl.BlockSpec(memory_space=pltpu.MemorySpace.VMEM)] * len(inputs),
        out_specs=pl.BlockSpec(memory_space=pltpu.MemorySpace.VMEM),
        compiler_params=pltpu.CompilerParams(
            # Safe on v5e (16 MiB default), v6e (32 MiB), v7x (64 MiB physical).
            vmem_limit_bytes=32 * 1024 * 1024),
    )(*inputs)

    out = out_slab.reshape(n, h, w, cout)
    return jnp.transpose(out, (0, 3, 1, 2))                  # NHWC -> NCHW


def init_params(key, input_channels, num_channels, use_1x1conv):
    ks = jax.random.split(key, 6)
    p = {
        "w1": jax.random.normal(ks[0], (3, 3, input_channels, num_channels), jnp.float32) * 0.1,
        "b1": jax.random.normal(ks[1], (1, num_channels), jnp.float32) * 0.01,
        "w2": jax.random.normal(ks[2], (3, 3, num_channels, num_channels), jnp.float32) * 0.1,
        "b2": jax.random.normal(ks[3], (1, num_channels), jnp.float32) * 0.01,
        "g1": jnp.ones((1, num_channels), jnp.float32),
        "be1": jnp.zeros((1, num_channels), jnp.float32),
        "g2": jnp.ones((1, num_channels), jnp.float32),
        "be2": jnp.zeros((1, num_channels), jnp.float32),
    }
    if use_1x1conv:
        p["w3"] = jax.random.normal(ks[4], (input_channels, num_channels), jnp.float32) * 0.1
        p["b3"] = jax.random.normal(ks[5], (1, num_channels), jnp.float32) * 0.01
    return p


def _reference(x_nchw, params, use_1x1conv):
    """Pure-JAX reference (training-mode BN; includes the conv biases the kernel folds)."""
    x = jnp.transpose(x_nchw, (0, 2, 3, 1)).astype(jnp.float32)

    def conv(xx, w, b):
        y = lax.conv_general_dilated(
            xx, w, window_strides=(1, 1), padding="SAME",
            dimension_numbers=("NHWC", "HWIO", "NHWC"),
            precision=lax.Precision.HIGHEST)
        return y + b.reshape(1, 1, 1, -1)

    def bn(y, g, be):
        mean = jnp.mean(y, axis=(0, 1, 2), keepdims=True)
        var = jnp.mean((y - mean) ** 2, axis=(0, 1, 2), keepdims=True)
        return (y - mean) * lax.rsqrt(var + _EPS) * g.reshape(1, 1, 1, -1) \
            + be.reshape(1, 1, 1, -1)

    y = jax.nn.relu(bn(conv(x, params["w1"], params["b1"]), params["g1"], params["be1"]))
    y = bn(conv(y, params["w2"], params["b2"]), params["g2"], params["be2"])
    sc = x
    if use_1x1conv:
        sc = jnp.einsum("nhwc,cd->nhwd", x, params["w3"],
                        precision=lax.Precision.HIGHEST) + params["b3"].reshape(1, 1, 1, -1)
    out = jax.nn.relu(y + sc)
    return jnp.transpose(out, (0, 3, 1, 2))


if __name__ == "__main__":
    key = jax.random.PRNGKey(0)
    k1, k2, k3, k4 = jax.random.split(key, 4)

    # Case 1: projection shortcut (use_1x1conv=True), Cin=4 -> Cout=8, NCHW (2,4,16,16).
    x = jax.random.normal(k1, (2, 4, 16, 16), jnp.float32)
    params = init_params(k2, 4, 8, use_1x1conv=True)
    out = jax.block_until_ready(residual_forward(x, params, use_1x1conv=True))
    ref = jax.block_until_ready(_reference(x, params, True))
    assert out.shape == ref.shape == (2, 8, 16, 16)
    rel = float(jnp.max(jnp.abs(out - ref)) / jnp.max(jnp.abs(ref)))
    assert rel < 2e-2, f"case1 relative error too large: {rel}"

    # Case 2: identity shortcut (use_1x1conv=False), Cin=Cout=8.
    x2 = jax.random.normal(k3, (2, 8, 16, 16), jnp.float32)
    params2 = init_params(k4, 8, 8, use_1x1conv=False)
    out2 = jax.block_until_ready(residual_forward(x2, params2, use_1x1conv=False))
    ref2 = jax.block_until_ready(_reference(x2, params2, False))
    assert out2.shape == ref2.shape == (2, 8, 16, 16)
    rel2 = float(jnp.max(jnp.abs(out2 - ref2)) / jnp.max(jnp.abs(ref2)))
    assert rel2 < 2e-2, f"case2 relative error too large: {rel2}"

    print("KERNEL_OK")
</pallas_src>

<mosaic_0001>
module attributes {stable_mosaic.version = 11 : i64} {
  func.func @_residual_kernel(%arg0: memref<32x128xbf16, #tpu.memory_space<vmem>>, %arg1: memref<384x256xbf16, #tpu.memory_space<vmem>>, %arg2: memref<384x128xbf16, #tpu.memory_space<vmem>>, %arg3: memref<1x128xf32, #tpu.memory_space<vmem>>, %arg4: memref<1x128xf32, #tpu.memory_space<vmem>>, %arg5: memref<1x128xf32, #tpu.memory_space<vmem>>, %arg6: memref<1x128xf32, #tpu.memory_space<vmem>>, %arg7: memref<1x128xf32, #tpu.memory_space<vmem>>, %arg8: memref<32x128xf32, #tpu.memory_space<vmem>>) attributes {dimension_semantics = [], scalar_prefetch = 0 : i64, scratch_operands = 0 : i64, tpu.core_type = #tpu.core_type<tc>} {
    %0 = tpu.iota {dimensions = array<i32: 0>} : vector<32x1xi32>
    %c16_i32 = arith.constant 16 : i32
    %c0_i32 = arith.constant 0 : i32
    %1 = arith.cmpi eq, %c16_i32, %c0_i32 : i32
    %c1_i32 = arith.constant 1 : i32
    %2 = arith.select %1, %c1_i32, %c16_i32 : i32
    %3 = vector.broadcast %2 : i32 to vector<32x1xi32>
    %4 = arith.remsi %0, %3 : vector<32x1xi32>
    %c0_i32_0 = arith.constant 0 : i32
    %5 = vector.broadcast %c0_i32_0 : i32 to vector<32x1xi32>
    %6 = arith.cmpi ne, %4, %5 : vector<32x1xi32>
    %c0_i32_1 = arith.constant 0 : i32
    %7 = vector.broadcast %c0_i32_1 : i32 to vector<32x1xi32>
    %8 = arith.cmpi slt, %4, %7 : vector<32x1xi32>
    %c0_i32_2 = arith.constant 0 : i32
    %9 = arith.cmpi slt, %2, %c0_i32_2 : i32
    %10 = vector.broadcast %9 : i1 to vector<32x1xi1>
    %11 = vector.broadcast %10 : vector<32x1xi1> to vector<32x1xi1>
    %12 = arith.xori %8, %11 : vector<32x1xi1>
    %13 = arith.andi %12, %6 : vector<32x1xi1>
    %14 = vector.broadcast %2 : i32 to vector<32x1xi32>
    %15 = arith.addi %4, %14 : vector<32x1xi32>
    %16 = arith.select %13, %15, %4 : vector<32x1xi1>, vector<32x1xi32>
    %c0_i32_3 = arith.constant 0 : i32
    %17 = vector.broadcast %c0_i32_3 : i32 to vector<32x1xi32>
    %18 = arith.cmpi ne, %16, %17 : vector<32x1xi32>
    %19 = arith.extui %18 : vector<32x1xi1> to vector<32x1xi32>
    %20 = arith.sitofp %19 : vector<32x1xi32> to vector<32x1xf32>
    %c15_i32 = arith.constant 15 : i32
    %21 = vector.broadcast %c15_i32 : i32 to vector<32x1xi32>
    %22 = arith.cmpi ne, %16, %21 : vector<32x1xi32>
    %23 = arith.extui %22 : vector<32x1xi1> to vector<32x1xi32>
    %24 = arith.sitofp %23 : vector<32x1xi32> to vector<32x1xf32>
    %c0 = arith.constant 0 : index
    %c0_4 = arith.constant 0 : index
    %25 = vector.load %arg0[%c0, %c0_4] : memref<32x128xbf16, #tpu.memory_space<vmem>>, vector<32x128xbf16>
    %26 = arith.extf %25 : vector<32x128xbf16> to vector<32x128xf32>
    %c1_i32_5 = arith.constant 1 : i32
    %27 = tpu.dynamic_rotate %26 by %c1_i32_5 dim 0 : vector<32x128xf32>, i32 -> vector<32x128xf32>
    %28 = vector.broadcast %20 : vector<32x1xf32> to vector<32x128xf32>
    %29 = arith.mulf %27, %28 : vector<32x128xf32>
    %c31_i32 = arith.constant 31 : i32
    %30 = tpu.dynamic_rotate %26 by %c31_i32 dim 0 : vector<32x128xf32>, i32 -> vector<32x128xf32>
    %31 = vector.broadcast %24 : vector<32x1xf32> to vector<32x128xf32>
    %32 = arith.mulf %30, %31 : vector<32x128xf32>
    %33 = tpu.concatenate %29, %26, %32 in 1 : vector<32x128xf32>, vector<32x128xf32>, vector<32x128xf32> -> vector<32x384xf32>
    %34 = arith.truncf %33 : vector<32x384xf32> to vector<32x384xbf16>
    %c0_6 = arith.constant 0 : index
    %c0_7 = arith.constant 0 : index
    %35 = vector.load %arg1[%c0_6, %c0_7] : memref<384x256xbf16, #tpu.memory_space<vmem>>, vector<384x256xbf16>
    %cst = arith.constant dense<0.000000e+00> : vector<32x256xf32>
    %36 = tpu.matmul %34, %35, %cst {dimension_numbers = #tpu.dot_dimension_numbers<[1], [0], [0], [1], [0, 0, 1, 1], [], []>} : vector<32x384xbf16>, vector<384x256xbf16>, vector<32x256xf32> -> vector<32x256xf32>
    %37 = vector.extract_strided_slice %36 {offsets = [0, 0], sizes = [32, 128], strides = [1, 1]} : vector<32x256xf32> to vector<32x128xf32>
    %38 = vector.extract_strided_slice %36 {offsets = [0, 128], sizes = [32, 128], strides = [1, 1]} : vector<32x256xf32> to vector<32x128xf32>
    %c0_8 = arith.constant 0 : index
    %c0_9 = arith.constant 0 : index
    %39 = vector.load %arg7[%c0_8, %c0_9] : memref<1x128xf32, #tpu.memory_space<vmem>>, vector<1x128xf32>
    %40 = vector.broadcast %39 : vector<1x128xf32> to vector<32x128xf32>
    %41 = arith.addf %38, %40 : vector<32x128xf32>
    %cst_10 = arith.constant dense<0.000000e+00> : vector<128xf32>
    %42 = vector.multi_reduction <add>, %37, %cst_10 [0] : vector<32x128xf32> to vector<128xf32>
    %43 = vector.shape_cast %42 : vector<128xf32> to vector<1x128xf32>
    %c8_i32 = arith.constant 8 : i32
    %44 = tpu.dynamic_rotate %43 by %c8_i32 dim 1 : vector<1x128xf32>, i32 -> vector<1x128xf32>
    %45 = arith.addf %43, %44 : vector<1x128xf32>
    %c16_i32_11 = arith.constant 16 : i32
    %46 = tpu.dynamic_rotate %45 by %c16_i32_11 dim 1 : vector<1x128xf32>, i32 -> vector<1x128xf32>
    %47 = arith.addf %45, %46 : vector<1x128xf32>
    %c32_i32 = arith.constant 32 : i32
    %48 = tpu.dynamic_rotate %47 by %c32_i32 dim 1 : vector<1x128xf32>, i32 -> vector<1x128xf32>
    %49 = arith.addf %47, %48 : vector<1x128xf32>
    %c64_i32 = arith.constant 64 : i32
    %50 = tpu.dynamic_rotate %49 by %c64_i32 dim 1 : vector<1x128xf32>, i32 -> vector<1x128xf32>
    %51 = arith.addf %49, %50 : vector<1x128xf32>
    %cst_12 = arith.constant 0.001953125 : f32
    %52 = vector.broadcast %cst_12 : f32 to vector<1x128xf32>
    %53 = arith.mulf %51, %52 : vector<1x128xf32>
    %54 = vector.broadcast %53 : vector<1x128xf32> to vector<32x128xf32>
    %55 = arith.subf %37, %54 : vector<32x128xf32>
    %56 = arith.mulf %55, %55 : vector<32x128xf32>
    %cst_13 = arith.constant dense<0.000000e+00> : vector<128xf32>
    %57 = vector.multi_reduction <add>, %56, %cst_13 [0] : vector<32x128xf32> to vector<128xf32>
    %58 = vector.shape_cast %57 : vector<128xf32> to vector<1x128xf32>
    %c8_i32_14 = arith.constant 8 : i32
    %59 = tpu.dynamic_rotate %58 by %c8_i32_14 dim 1 : vector<1x128xf32>, i32 -> vector<1x128xf32>
    %60 = arith.addf %58, %59 : vector<1x128xf32>
    %c16_i32_15 = arith.constant 16 : i32
    %61 = tpu.dynamic_rotate %60 by %c16_i32_15 dim 1 : vector<1x128xf32>, i32 -> vector<1x128xf32>
    %62 = arith.addf %60, %61 : vector<1x128xf32>
    %c32_i32_16 = arith.constant 32 : i32
    %63 = tpu.dynamic_rotate %62 by %c32_i32_16 dim 1 : vector<1x128xf32>, i32 -> vector<1x128xf32>
    %64 = arith.addf %62, %63 : vector<1x128xf32>
    %c64_i32_17 = arith.constant 64 : i32
    %65 = tpu.dynamic_rotate %64 by %c64_i32_17 dim 1 : vector<1x128xf32>, i32 -> vector<1x128xf32>
    %66 = arith.addf %64, %65 : vector<1x128xf32>
    %cst_18 = arith.constant 0.001953125 : f32
    %67 = vector.broadcast %cst_18 : f32 to vector<1x128xf32>
    %68 = arith.mulf %66, %67 : vector<1x128xf32>
    %c0_19 = arith.constant 0 : index
    %c0_20 = arith.constant 0 : index
    %69 = vector.load %arg3[%c0_19, %c0_20] : memref<1x128xf32, #tpu.memory_space<vmem>>, vector<1x128xf32>
    %cst_21 = arith.constant 9.99999974E-6 : f32
    %70 = vector.broadcast %cst_21 : f32 to vector<1x128xf32>
    %71 = arith.addf %68, %70 : vector<1x128xf32>
    %72 = math.rsqrt %71 : vector<1x128xf32>
    %73 = arith.mulf %69, %72 : vector<1x128xf32>
    %74 = vector.broadcast %73 : vector<1x128xf32> to vector<32x128xf32>
    %75 = arith.mulf %55, %74 : vector<32x128xf32>
    %c0_22 = arith.constant 0 : index
    %c0_23 = arith.constant 0 : index
    %76 = vector.load %arg4[%c0_22, %c0_23] : memref<1x128xf32, #tpu.memory_space<vmem>>, vector<1x128xf32>
    %77 = vector.broadcast %76 : vector<1x128xf32> to vector<32x128xf32>
    %78 = arith.addf %75, %77 : vector<32x128xf32>
    %cst_24 = arith.constant 0.000000e+00 : f32
    %79 = vector.broadcast %cst_24 : f32 to vector<32x128xf32>
    %80 = arith.maximumf %78, %79 : vector<32x128xf32>
    %c1_i32_25 = arith.constant 1 : i32
    %81 = tpu.dynamic_rotate %80 by %c1_i32_25 dim 0 : vector<32x128xf32>, i32 -> vector<32x128xf32>
    %82 = vector.broadcast %20 : vector<32x1xf32> to vector<32x128xf32>
    %83 = arith.mulf %81, %82 : vector<32x128xf32>
    %c31_i32_26 = arith.constant 31 : i32
    %84 = tpu.dynamic_rotate %80 by %c31_i32_26 dim 0 : vector<32x128xf32>, i32 -> vector<32x128xf32>
    %85 = vector.broadcast %24 : vector<32x1xf32> to vector<32x128xf32>
    %86 = arith.mulf %84, %85 : vector<32x128xf32>
    %87 = tpu.concatenate %83, %80, %86 in 1 : vector<32x128xf32>, vector<32x128xf32>, vector<32x128xf32> -> vector<32x384xf32>
    %88 = arith.truncf %87 : vector<32x384xf32> to vector<32x384xbf16>
    %c0_27 = arith.constant 0 : index
    %c0_28 = arith.constant 0 : index
    %89 = vector.load %arg2[%c0_27, %c0_28] : memref<384x128xbf16, #tpu.memory_space<vmem>>, vector<384x128xbf16>
    %cst_29 = arith.constant dense<0.000000e+00> : vector<32x128xf32>
    %90 = tpu.matmul %88, %89, %cst_29 {dimension_numbers = #tpu.dot_dimension_numbers<[1], [0], [0], [1], [0, 0, 1, 1], [], []>} : vector<32x384xbf16>, vector<384x128xbf16>, vector<32x128xf32> -> vector<32x128xf32>
    %cst_30 = arith.constant dense<0.000000e+00> : vector<128xf32>
    %91 = vector.multi_reduction <add>, %90, %cst_30 [0] : vector<32x128xf32> to vector<128xf32>
    %92 = vector.shape_cast %91 : vector<128xf32> to vector<1x128xf32>
    %c8_i32_31 = arith.constant 8 : i32
    %93 = tpu.dynamic_rotate %92 by %c8_i32_31 dim 1 : vector<1x128xf32>, i32 -> vector<1x128xf32>
    %94 = arith.addf %92, %93 : vector<1x128xf32>
    %c16_i32_32 = arith.constant 16 : i32
    %95 = tpu.dynamic_rotate %94 by %c16_i32_32 dim 1 : vector<1x128xf32>, i32 -> vector<1x128xf32>
    %96 = arith.addf %94, %95 : vector<1x128xf32>
    %c32_i32_33 = arith.constant 32 : i32
    %97 = tpu.dynamic_rotate %96 by %c32_i32_33 dim 1 : vector<1x128xf32>, i32 -> vector<1x128xf32>
    %98 = arith.addf %96, %97 : vector<1x128xf32>
    %c64_i32_34 = arith.constant 64 : i32
    %99 = tpu.dynamic_rotate %98 by %c64_i32_34 dim 1 : vector<1x128xf32>, i32 -> vector<1x128xf32>
    %100 = arith.addf %98, %99 : vector<1x128xf32>
    %cst_35 = arith.constant 0.001953125 : f32
    %101 = vector.broadcast %cst_35 : f32 to vector<1x128xf32>
    %102 = arith.mulf %100, %101 : vector<1x128xf32>
    %103 = vector.broadcast %102 : vector<1x128xf32> to vector<32x128xf32>
    %104 = arith.subf %90, %103 : vector<32x128xf32>
    %105 = arith.mulf %104, %104 : vector<32x128xf32>
    %cst_36 = arith.constant dense<0.000000e+00> : vector<128xf32>
    %106 = vector.multi_reduction <add>, %105, %cst_36 [0] : vector<32x128xf32> to vector<128xf32>
    %107 = vector.shape_cast %106 : vector<128xf32> to vector<1x128xf32>
    %c8_i32_37 = arith.constant 8 : i32
    %108 = tpu.dynamic_rotate %107 by %c8_i32_37 dim 1 : vector<1x128xf32>, i32 -> vector<1x128xf32>
    %109 = arith.addf %107, %108 : vector<1x128xf32>
    %c16_i32_38 = arith.constant 16 : i32
    %110 = tpu.dynamic_rotate %109 by %c16_i32_38 dim 1 : vector<1x128xf32>, i32 -> vector<1x128xf32>
    %111 = arith.addf %109, %110 : vector<1x128xf32>
    %c32_i32_39 = arith.constant 32 : i32
    %112 = tpu.dynamic_rotate %111 by %c32_i32_39 dim 1 : vector<1x128xf32>, i32 -> vector<1x128xf32>
    %113 = arith.addf %111, %112 : vector<1x128xf32>
    %c64_i32_40 = arith.constant 64 : i32
    %114 = tpu.dynamic_rotate %113 by %c64_i32_40 dim 1 : vector<1x128xf32>, i32 -> vector<1x128xf32>
    %115 = arith.addf %113, %114 : vector<1x128xf32>
    %cst_41 = arith.constant 0.001953125 : f32
    %116 = vector.broadcast %cst_41 : f32 to vector<1x128xf32>
    %117 = arith.mulf %115, %116 : vector<1x128xf32>
    %c0_42 = arith.constant 0 : index
    %c0_43 = arith.constant 0 : index
    %118 = vector.load %arg5[%c0_42, %c0_43] : memref<1x128xf32, #tpu.memory_space<vmem>>, vector<1x128xf32>
    %cst_44 = arith.constant 9.99999974E-6 : f32
    %119 = vector.broadcast %cst_44 : f32 to vector<1x128xf32>
    %120 = arith.addf %117, %119 : vector<1x128xf32>
    %121 = math.rsqrt %120 : vector<1x128xf32>
    %122 = arith.mulf %118, %121 : vector<1x128xf32>
    %123 = vector.broadcast %122 : vector<1x128xf32> to vector<32x128xf32>
    %124 = arith.mulf %104, %123 : vector<32x128xf32>
    %c0_45 = arith.constant 0 : index
    %c0_46 = arith.constant 0 : index
    %125 = vector.load %arg6[%c0_45, %c0_46] : memref<1x128xf32, #tpu.memory_space<vmem>>, vector<1x128xf32>
    %126 = vector.broadcast %125 : vector<1x128xf32> to vector<32x128xf32>
    %127 = arith.addf %124, %126 : vector<32x128xf32>
    %128 = arith.addf %127, %41 : vector<32x128xf32>
    %cst_47 = arith.constant 0.000000e+00 : f32
    %129 = vector.broadcast %cst_47 : f32 to vector<32x128xf32>
    %130 = arith.maximumf %128, %129 : vector<32x128xf32>
    %c0_48 = arith.constant 0 : index
    %c0_49 = arith.constant 0 : index
    %131 = vector.load %arg8[%c0_48, %c0_49] : memref<32x128xf32, #tpu.memory_space<vmem>>, vector<32x128xf32>
    tpu.vector_store %arg8[%c0_48, %c0_49], %130 {strides = array<i32>} : memref<32x128xf32, #tpu.memory_space<vmem>>, vector<32x128xf32>,
    return
  }
}

</mosaic_0001>

<llo_original>
// kernel: tpu_custom_call.1
$region0: #{tpu_custom_call.1}
  #allocation0 [shape = 'u32[]', space=smem, size = 0x4, offset = 0x4, fixed_abs, tag = 'smem constant byte address 0x4 - core index']
  #allocation1 [shape = 'u32[144,128]{1,0:T(1,128)}', space=vmem, size = 0x12000, scoped, tag = 'internal scratch']
  %s0 = inlined_call_operand.hbm [shape: bf16[32,128], index: 0, kind: input, shape index: {}]
  %s1 = inlined_call_operand.hbm [shape: bf16[384,256], index: 1, kind: input, shape index: {}]
  %s2 = inlined_call_operand.hbm [shape: bf16[384,128], index: 2, kind: input, shape index: {}]
  %s3 = inlined_call_operand.vmem [shape: f32[1,128], index: 3, kind: input, shape index: {}]
  %s4 = inlined_call_operand.vmem [shape: f32[1,128], index: 4, kind: input, shape index: {}]
  %s5 = inlined_call_operand.vmem [shape: f32[1,128], index: 5, kind: input, shape index: {}]
  %s6 = inlined_call_operand.vmem [shape: f32[1,128], index: 6, kind: input, shape index: {}]
  %s7 = inlined_call_operand.vmem [shape: f32[1,128], index: 7, kind: input, shape index: {}]
  %s8 = inlined_call_operand.hbm [shape: f32[32,128], index: 8, kind: output, shape index: {}]
  %s9 = sld [smem:[#allocation0]]
  $region54: #{tpu_custom_call.1} parent=0
    _
  %s11 = ssub.s32 1, %s9
  %s12 = scalar_select 0, %s11, %s9
  $region1: #{tpu_custom_call.1} parent=0
    #allocation2 [shape = 'u8[8192]{0}', space=vmem, size = 0x2000, scoped, tag = 'input window, operand 0, single buffered']
    #allocation3 [shape = 's32[1]{0}', space=sflag, size = 0x4, scoped, tag = 'scoped memory for tpu_custom_call.1']
    #allocation4 [shape = 's32[1]{0}', space=sflag, size = 0x4, scoped, tag = 'scoped memory for tpu_custom_call.1']
    #allocation5 [shape = 'u8[196608]{0}', space=vmem, size = 0x30000, scoped, tag = 'input window, operand 1, single buffered']
    #allocation6 [shape = 's32[1]{0}', space=sflag, size = 0x4, scoped, tag = 'scoped memory for tpu_custom_call.1']
    #allocation7 [shape = 'u8[98304]{0}', space=vmem, size = 0x18000, scoped, tag = 'input window, operand 2, single buffered']
    #allocation8 [shape = 'u8[16384]{0}', space=vmem, size = 0x4000, scoped, tag = 'output window, operand 0, single buffered']
    %13 = vsyncpa [#allocation3], 0
    %14 = vsyncpa [#allocation6], 0
    %15 = vsyncpa [#allocation4], 0
    // Predicated region
    $region2: #{tpu_custom_call.1} parent=1 // pred_check
      _
    $region3: #{tpu_custom_call.1} parent=1 // pred_check_branch
      %17 = sbr.rel (0) target = $region5
    $region4: #{tpu_custom_call.1} parent=1 // pred_region
      %s19 = ssub.s32 256, 256
      %20 = vsyncadd [#allocation3], %s19
      %s21 = sshll.u32 [#allocation2], 4
      %s22 = int_to_ptr.vmem [resolvable:$true] %s21
      %27 = dma.hbm_to_vmem [thread:$0]  %s0, 256, %s22, [#allocation3], 64, 64, 4
    $region5: #{tpu_custom_call.1} parent=1 // pred_fallthru
      _
    // Predicated region
    $region6: #{tpu_custom_call.1} parent=1 // pred_check
      _
    $region7: #{tpu_custom_call.1} parent=1 // pred_check_branch
      %29 = sbr.rel (0) target = $region9
    $region8: #{tpu_custom_call.1} parent=1 // pred_region
      %s31 = ssub.s32 6144, 6144
      %32 = vsyncadd [#allocation6], %s31
      %s33 = sshll.u32 [#allocation5], 4
      %s34 = int_to_ptr.vmem [resolvable:$true] %s33
      %39 = dma.hbm_to_vmem [thread:$0]  %s1, 6144, %s34, [#allocation6], 128, 128, 8
    $region9: #{tpu_custom_call.1} parent=1 // pred_fallthru
      _
    // Predicated region
    $region10: #{tpu_custom_call.1} parent=1 // pred_check
      _
    $region11: #{tpu_custom_call.1} parent=1 // pred_check_branch
      %41 = sbr.rel (0) target = $region13
    $region12: #{tpu_custom_call.1} parent=1 // pred_region
      %s43 = ssub.s32 3072, 3072
      %44 = vsyncadd [#allocation6], %s43
      %s45 = sshll.u32 [#allocation7], 4
      %s46 = int_to_ptr.vmem [resolvable:$true] %s45
      %51 = dma.hbm_to_vmem [thread:$0]  %s2, 3072, %s46, [#allocation6], 64, 64, 4
    $region13: #{tpu_custom_call.1} parent=1 // pred_fallthru
      _
    // Predicated region
    $region14: #{tpu_custom_call.1} parent=1 // pred_check
      _
    $region15: #{tpu_custom_call.1} parent=1 // pred_check_branch
      %53 = sbr.rel (0) target = $region17
    $region16: #{tpu_custom_call.1} parent=1 // pred_region
      _
    $region17: #{tpu_custom_call.1} parent=1 // pred_fallthru
      _
    // Predicated region
    $region18: #{tpu_custom_call.1} parent=1 // pred_check
      _
    $region19: #{tpu_custom_call.1} parent=1 // pred_check_branch
      %55 = sbr.rel (0) target = $region21
    $region20: #{tpu_custom_call.1} parent=1 // pred_region
      _
    $region21: #{tpu_custom_call.1} parent=1 // pred_fallthru
      _
    // Predicated region
    $region22: #{tpu_custom_call.1} parent=1 // pred_check
      _
    $region23: #{tpu_custom_call.1} parent=1 // pred_check_branch
      %57 = sbr.rel (0) target = $region25
    $region24: #{tpu_custom_call.1} parent=1 // pred_region
      _
    $region25: #{tpu_custom_call.1} parent=1 // pred_fallthru
      _
    // Predicated region
    $region26: #{tpu_custom_call.1} parent=1 // pred_check
      _
    $region27: #{tpu_custom_call.1} parent=1 // pred_check_branch
      %59 = sbr.rel (0) target = $region29
    $region28: #{tpu_custom_call.1} parent=1 // pred_region
      _
    $region29: #{tpu_custom_call.1} parent=1 // pred_fallthru
      _
    // Predicated region
    $region30: #{tpu_custom_call.1} parent=1 // pred_check
      _
    $region31: #{tpu_custom_call.1} parent=1 // pred_check_branch
      %61 = sbr.rel (0) target = $region33
    $region32: #{tpu_custom_call.1} parent=1 // pred_region
      _
    $region33: #{tpu_custom_call.1} parent=1 // pred_fallthru
      _
    // Predicated region
    $region34: #{tpu_custom_call.1} parent=1 // pred_check
      _
    $region35: #{tpu_custom_call.1} parent=1 // pred_check_branch
      %63 = sbr.rel (0) target = $region37
    $region36: #{tpu_custom_call.1} parent=1 // pred_region
      %64 = dma.done [#allocation3], 256
    $region37: #{tpu_custom_call.1} parent=1 // pred_fallthru
      _
    // Predicated region
    $region38: #{tpu_custom_call.1} parent=1 // pred_check
      _
    $region39: #{tpu_custom_call.1} parent=1 // pred_check_branch
      %66 = sbr.rel (0) target = $region41
    $region40: #{tpu_custom_call.1} parent=1 // pred_region
      %67 = dma.done [#allocation6], 6144
    $region41: #{tpu_custom_call.1} parent=1 // pred_fallthru
      _
    // Predicated region
    $region42: #{tpu_custom_call.1} parent=1 // pred_check
      _
    $region43: #{tpu_custom_call.1} parent=1 // pred_check_branch
      %69 = sbr.rel (0) target = $region45
    $region44: #{tpu_custom_call.1} parent=1 // pred_region
      %70 = dma.done [#allocation6], 3072
    $region45: #{tpu_custom_call.1} parent=1 // pred_fallthru
      _
    %v72 = vlaneseq
    %v73 = vshrl.u32 %v72, 7
    %v74 = vadd.s32 %v73, 8
    %v75 = vadd.s32 %v73, 16
    %v76 = vadd.s32 %v73, 24
    %vm77 = vcmp.lt.s32.totalorder %v73, 0
    %v78 = vsub.s32 0, %v73
    %v79 = vsel %vm77, %v78, %v73
    %v80 = vshrl.u32 %v79, 4
    %v81 = vand.u32 %v79, 15
    %v82 = vsub.s32 0, %v81
    %v83 = vsel %vm77, %v82, %v81
    %vm84 = vcmp.lt.s32.totalorder %v74, 0
    %v85 = vsub.s32 0, %v74
    %v86 = vsel %vm84, %v85, %v74
    %v87 = vshrl.u32 %v86, 4
    %v88 = vand.u32 %v86, 15
    %v89 = vsub.s32 0, %v88
    %v90 = vsel %vm84, %v89, %v88
    %vm91 = vcmp.lt.s32.totalorder %v75, 0
    %v92 = vsub.s32 0, %v75
    %v93 = vsel %vm91, %v92, %v75
    %v94 = vshrl.u32 %v93, 4
    %v95 = vand.u32 %v93, 15
    %v96 = vsub.s32 0, %v95
    %v97 = vsel %vm91, %v96, %v95
    %vm98 = vcmp.lt.s32.totalorder %v76, 0
    %v99 = vsub.s32 0, %v76
    %v100 = vsel %vm98, %v99, %v76
    %v101 = vshrl.u32 %v100, 4
    %v102 = vand.u32 %v100, 15
    %v103 = vsub.s32 0, %v102
    %v104 = vsel %vm98, %v103, %v102
    %vm105 = vcmp.ne.s32.totalorder %v83, 0
    %vm106 = vcmp.ne.s32.totalorder %v90, 0
    %vm107 = vcmp.ne.s32.totalorder %v97, 0
    %vm108 = vcmp.ne.s32.totalorder %v104, 0
    %vm109 = vcmp.lt.s32.totalorder %v83, 0
    %vm110 = vcmp.lt.s32.totalorder %v90, 0
    %vm111 = vcmp.lt.s32.totalorder %v97, 0
    %vm112 = vcmp.lt.s32.totalorder %v104, 0
    %vm113 = vmand %vm109, %vm105
    %vm114 = vmand %vm110, %vm106
    %vm115 = vmand %vm111, %vm107
    %vm116 = vmand %vm112, %vm108
    %v117 = vadd.s32 %v83, 16
    %v118 = vadd.s32 %v90, 16
    %v119 = vadd.s32 %v97, 16
    %v120 = vadd.s32 %v104, 16
    %v121 = vsel %vm113, %v117, %v83
    %v122 = vsel %vm114, %v118, %v90
    %v123 = vsel %vm115, %v119, %v97
    %v124 = vsel %vm116, %v120, %v104
    %vm125 = vcmp.ne.s32.totalorder %v121, 0
    %vm126 = vcmp.ne.s32.totalorder %v122, 0
    %vm127 = vcmp.ne.s32.totalorder %v123, 0
    %vm128 = vcmp.ne.s32.totalorder %v124, 0
    %v129 = vsel %vm125, 1, 0
    %v130 = vsel %vm126, 1, 0
    %v131 = vsel %vm127, 1, 0
    %v132 = vsel %vm128, 1, 0
    %v133 = vcvt.s32.f32 %v129
    %v134 = vcvt.s32.f32 %v130
    %v135 = vcvt.s32.f32 %v131
    %v136 = vcvt.s32.f32 %v132
    %vm137 = vcmp.ne.s32.totalorder %v121, 15
    %vm138 = vcmp.ne.s32.totalorder %v122, 15
    %vm139 = vcmp.ne.s32.totalorder %v123, 15
    %vm140 = vcmp.ne.s32.totalorder %v124, 15
    %v141 = vsel %vm137, 1, 0
    %v142 = vsel %vm138, 1, 0
    %v143 = vsel %vm139, 1, 0
    %v144 = vsel %vm140, 1, 0
    %v145 = vcvt.s32.f32 %v141
    %v146 = vcvt.s32.f32 %v142
    %v147 = vcvt.s32.f32 %v143
    %v148 = vcvt.s32.f32 %v144
    %v149 = vld [vmem:[#allocation2] sm:$0xf]
    %v150 = vld [vmem:[#allocation2 + $0x4] sm:$0xf]
    %v151 = vld [vmem:[#allocation2 + $0x8] sm:$0xf]
    %v152 = vld [vmem:[#allocation2 + $0xc] sm:$0xf]
    %v153 = vunpack.c.l.bf16 %v149
    %v154 = vunpack.c.l.bf16 %v150
    %v155 = vunpack.c.l.bf16 %v151
    %v156 = vunpack.c.l.bf16 %v152
    %v157 = vrot.slane %v153, 7
    %v158 = vrot.slane %v154, 7
    %v159 = vrot.slane %v155, 7
    %v160 = vrot.slane %v156, 7
    %vm161 = vcmp.lt.s32.totalorder %v73, 1
    %v162 = vsel %vm161, %v159, %v160
    %v163 = vsel %vm161, %v158, %v159
    %v164 = vsel %vm161, %v157, %v158
    %v165 = vsel %vm161, %v160, %v157
    %v166 = vmul.f32 %v165, %v133
    %v167 = vmul.f32 %v164, %v134
    %v168 = vmul.f32 %v163, %v135
    %v169 = vmul.f32 %v162, %v136
    %v170 = vrot.slane %v153, 1
    %v171 = vrot.slane %v154, 1
    %v172 = vrot.slane %v155, 1
    %v173 = vrot.slane %v156, 1
    %vm174 = vcmp.lt.s32.totalorder %v73, 7
    %v175 = vsel %vm174, %v172, %v173
    %v176 = vsel %vm174, %v171, %v172
    %v177 = vsel %vm174, %v170, %v171
    %v178 = vsel %vm174, %v173, %v170
    %v179 = vmul.f32 %v177, %v145
    %v180 = vmul.f32 %v176, %v146
    %v181 = vmul.f32 %v175, %v147
    %v182 = vmul.f32 %v178, %v148
    %v183 = vpack.c.bf16 %v167, %v166
    %v184 = vpack.c.bf16 %v154, %v153
    %v185 = vpack.c.bf16 %v180, %v179
    %v186 = vpack.c.bf16 %v169, %v168
    %v187 = vpack.c.bf16 %v156, %v155
    %v188 = vpack.c.bf16 %v182, %v181
    %v189 = vld [vmem:[#allocation5] sm:$0xff]
    %v190 = vld [vmem:[#allocation5 + $0x8] sm:$0xff]
    %v191 = vld [vmem:[#allocation5 + $0x10] sm:$0xff]
    %v192 = vld [vmem:[#allocation5 + $0x18] sm:$0xff]
    %v193 = vld [vmem:[#allocation5 + $0x20] sm:$0xff]
    %v194 = vld [vmem:[#allocation5 + $0x28] sm:$0xff]
    %v195 = vld [vmem:[#allocation5 + $0x30] sm:$0xff]
    %v196 = vld [vmem:[#allocation5 + $0x38] sm:$0xff]
    %v197 = vld [vmem:[#allocation5 + $0x40] sm:$0xff]
    %v198 = vld [vmem:[#allocation5 + $0x48] sm:$0xff]
    %v199 = vld [vmem:[#allocation5 + $0x50] sm:$0xff]
    %v200 = vld [vmem:[#allocation5 + $0x58] sm:$0xff]
    %v201 = vld [vmem:[#allocation5 + $0x60] sm:$0xff]
    %v202 = vld [vmem:[#allocation5 + $0x68] sm:$0xff]
    %v203 = vld [vmem:[#allocation5 + $0x70] sm:$0xff]
    %v204 = vld [vmem:[#allocation5 + $0x78] sm:$0xff]
    %v205 = vld [vmem:[#allocation5 + $0x80] sm:$0xff]
    %v206 = vld [vmem:[#allocation5 + $0x88] sm:$0xff]
    %v207 = vld [vmem:[#allocation5 + $0x90] sm:$0xff]
    %v208 = vld [vmem:[#allocation5 + $0x98] sm:$0xff]
    %v209 = vld [vmem:[#allocation5 + $0xa0] sm:$0xff]
    %v210 = vld [vmem:[#allocation5 + $0xa8] sm:$0xff]
    %v211 = vld [vmem:[#allocation5 + $0xb0] sm:$0xff]
    %v212 = vld [vmem:[#allocation5 + $0xb8] sm:$0xff]
    %v213 = vld [vmem:[#allocation5 + $0xc0] sm:$0xff]
    %v214 = vld [vmem:[#allocation5 + $0xc8] sm:$0xff]
    %v215 = vld [vmem:[#allocation5 + $0xd0] sm:$0xff]
    %v216 = vld [vmem:[#allocation5 + $0xd8] sm:$0xff]
    %v217 = vld [vmem:[#allocation5 + $0xe0] sm:$0xff]
    %v218 = vld [vmem:[#allocation5 + $0xe8] sm:$0xff]
    %v219 = vld [vmem:[#allocation5 + $0xf0] sm:$0xff]
    %v220 = vld [vmem:[#allocation5 + $0xf8] sm:$0xff]
    %v221 = vld [vmem:[#allocation5 + $0x100] sm:$0xff]
    %v222 = vld [vmem:[#allocation5 + $0x108] sm:$0xff]
    %v223 = vld [vmem:[#allocation5 + $0x110] sm:$0xff]
    %v224 = vld [vmem:[#allocation5 + $0x118] sm:$0xff]
    %v225 = vld [vmem:[#allocation5 + $0x120] sm:$0xff]
    %v226 = vld [vmem:[#allocation5 + $0x128] sm:$0xff]
    %v227 = vld [vmem:[#allocation5 + $0x130] sm:$0xff]
    %v228 = vld [vmem:[#allocation5 + $0x138] sm:$0xff]
    %v229 = vld [vmem:[#allocation5 + $0x140] sm:$0xff]
    %v230 = vld [vmem:[#allocation5 + $0x148] sm:$0xff]
    %v231 = vld [vmem:[#allocation5 + $0x150] sm:$0xff]
    %v232 = vld [vmem:[#allocation5 + $0x158] sm:$0xff]
    %v233 = vld [vmem:[#allocation5 + $0x160] sm:$0xff]
    %v234 = vld [vmem:[#allocation5 + $0x168] sm:$0xff]
    %v235 = vld [vmem:[#allocation5 + $0x170] sm:$0xff]
    %v236 = vld [vmem:[#allocation5 + $0x178] sm:$0xff]
    %v285 = vunpack.c.l.b16 %v189
    %v286 = vunpack.c.h.b16 %v189
    %v287 = vunpack.c.l.b16 %v190
    %v288 = vunpack.c.h.b16 %v190
    %v289 = vunpack.c.l.b16 %v191
    %v290 = vunpack.c.h.b16 %v191
    %v291 = vunpack.c.l.b16 %v192
    %v292 = vunpack.c.h.b16 %v192
    %v293 = vunpack.c.l.b16 %v193
    %v294 = vunpack.c.h.b16 %v193
    %v295 = vunpack.c.l.b16 %v194
    %v296 = vunpack.c.h.b16 %v194
    %v297 = vunpack.c.l.b16 %v195
    %v298 = vunpack.c.h.b16 %v195
    %v299 = vunpack.c.l.b16 %v196
    %v300 = vunpack.c.h.b16 %v196
    %v301 = vunpack.c.l.b16 %v197
    %v302 = vunpack.c.h.b16 %v197
    %v303 = vunpack.c.l.b16 %v198
    %v304 = vunpack.c.h.b16 %v198
    %v305 = vunpack.c.l.b16 %v199
    %v306 = vunpack.c.h.b16 %v199
    %v307 = vunpack.c.l.b16 %v200
    %v308 = vunpack.c.h.b16 %v200
    %v309 = vunpack.c.l.b16 %v201
    %v310 = vunpack.c.h.b16 %v201
    %v311 = vunpack.c.l.b16 %v202
    %v312 = vunpack.c.h.b16 %v202
    %v313 = vunpack.c.l.b16 %v203
    %v314 = vunpack.c.h.b16 %v203
    %v315 = vunpack.c.l.b16 %v204
    %v316 = vunpack.c.h.b16 %v204
    %v317 = vunpack.c.l.b16 %v205
    %v318 = vunpack.c.h.b16 %v205
    %v319 = vunpack.c.l.b16 %v206
    %v320 = vunpack.c.h.b16 %v206
    %v321 = vunpack.c.l.b16 %v207
    %v322 = vunpack.c.h.b16 %v207
    %v323 = vunpack.c.l.b16 %v208
    %v324 = vunpack.c.h.b16 %v208
    %v325 = vunpack.c.l.b16 %v209
    %v326 = vunpack.c.h.b16 %v209
    %v327 = vunpack.c.l.b16 %v210
    %v328 = vunpack.c.h.b16 %v210
    %v329 = vunpack.c.l.b16 %v211
    %v330 = vunpack.c.h.b16 %v211
    %v331 = vunpack.c.l.b16 %v212
    %v332 = vunpack.c.h.b16 %v212
    %v333 = vunpack.c.l.b16 %v213
    %v334 = vunpack.c.h.b16 %v213
    %v335 = vunpack.c.l.b16 %v214
    %v336 = vunpack.c.h.b16 %v214
    %v337 = vunpack.c.l.b16 %v215
    %v338 = vunpack.c.h.b16 %v215
    %v339 = vunpack.c.l.b16 %v216
    %v340 = vunpack.c.h.b16 %v216
    %v341 = vunpack.c.l.b16 %v217
    %v342 = vunpack.c.h.b16 %v217
    %v343 = vunpack.c.l.b16 %v218
    %v344 = vunpack.c.h.b16 %v218
    %v345 = vunpack.c.l.b16 %v219
    %v346 = vunpack.c.h.b16 %v219
    %v347 = vunpack.c.l.b16 %v220
    %v348 = vunpack.c.h.b16 %v220
    %v349 = vunpack.c.l.b16 %v221
    %v350 = vunpack.c.h.b16 %v221
    %v351 = vunpack.c.l.b16 %v222
    %v352 = vunpack.c.h.b16 %v222
    %v353 = vunpack.c.l.b16 %v223
    %v354 = vunpack.c.h.b16 %v223
    %v355 = vunpack.c.l.b16 %v224
    %v356 = vunpack.c.h.b16 %v224
    %v357 = vunpack.c.l.b16 %v225
    %v358 = vunpack.c.h.b16 %v225
    %v359 = vunpack.c.l.b16 %v226
    %v360 = vunpack.c.h.b16 %v226
    %v361 = vunpack.c.l.b16 %v227
    %v362 = vunpack.c.h.b16 %v227
    %v363 = vunpack.c.l.b16 %v228
    %v364 = vunpack.c.h.b16 %v228
    %v365 = vunpack.c.l.b16 %v229
    %v366 = vunpack.c.h.b16 %v229
    %v367 = vunpack.c.l.b16 %v230
    %v368 = vunpack.c.h.b16 %v230
    %v369 = vunpack.c.l.b16 %v231
    %v370 = vunpack.c.h.b16 %v231
    %v371 = vunpack.c.l.b16 %v232
    %v372 = vunpack.c.h.b16 %v232
    %v373 = vunpack.c.l.b16 %v233
    %v374 = vunpack.c.h.b16 %v233
    %v375 = vunpack.c.l.b16 %v234
    %v376 = vunpack.c.h.b16 %v234
    %v377 = vunpack.c.l.b16 %v235
    %v378 = vunpack.c.h.b16 %v235
    %v379 = vunpack.c.l.b16 %v236
    %v380 = vunpack.c.h.b16 %v236
    %v381 = vpack.c.b16 %v287, %v285
    %v382 = vpack.c.b16 %v288, %v286
    %v383 = vpack.c.b16 %v291, %v289
    %v384 = vpack.c.b16 %v292, %v290
    %v385 = vpack.c.b16 %v295, %v293
    %v386 = vpack.c.b16 %v296, %v294
    %v387 = vpack.c.b16 %v299, %v297
    %v388 = vpack.c.b16 %v300, %v298
    %v389 = vpack.c.b16 %v303, %v301
    %v390 = vpack.c.b16 %v304, %v302
    %v391 = vpack.c.b16 %v307, %v305
    %v392 = vpack.c.b16 %v308, %v306
    %v393 = vpack.c.b16 %v311, %v309
    %v394 = vpack.c.b16 %v312, %v310
    %v395 = vpack.c.b16 %v315, %v313
    %v396 = vpack.c.b16 %v316, %v314
    %v397 = vpack.c.b16 %v319, %v317
    %v398 = vpack.c.b16 %v320, %v318
    %v399 = vpack.c.b16 %v323, %v321
    %v400 = vpack.c.b16 %v324, %v322
    %v401 = vpack.c.b16 %v327, %v325
    %v402 = vpack.c.b16 %v328, %v326
    %v403 = vpack.c.b16 %v331, %v329
    %v404 = vpack.c.b16 %v332, %v330
    %v405 = vpack.c.b16 %v335, %v333
    %v406 = vpack.c.b16 %v336, %v334
    %v407 = vpack.c.b16 %v339, %v337
    %v408 = vpack.c.b16 %v340, %v338
    %v409 = vpack.c.b16 %v343, %v341
    %v410 = vpack.c.b16 %v344, %v342
    %v411 = vpack.c.b16 %v347, %v345
    %v412 = vpack.c.b16 %v348, %v346
    %v413 = vpack.c.b16 %v351, %v349
    %v414 = vpack.c.b16 %v352, %v350
    %v415 = vpack.c.b16 %v355, %v353
    %v416 = vpack.c.b16 %v356, %v354
    %v417 = vpack.c.b16 %v359, %v357
    %v418 = vpack.c.b16 %v360, %v358
    %v419 = vpack.c.b16 %v363, %v361
    %v420 = vpack.c.b16 %v364, %v362
    %v421 = vpack.c.b16 %v367, %v365
    %v422 = vpack.c.b16 %v368, %v366
    %v423 = vpack.c.b16 %v371, %v369
    %v424 = vpack.c.b16 %v372, %v370
    %v425 = vpack.c.b16 %v375, %v373
    %v426 = vpack.c.b16 %v376, %v374
    %v427 = vpack.c.b16 %v379, %v377
    %v428 = vpack.c.b16 %v380, %v378
    %477 = vmatprep.subr.bf16.mxu0 %v396
    %478 = vmatpush1.bf16.msra.mxu0 %v395
    %479 = vmatprep.subr.bf16.mxu0 %v394
    %480 = vmatpush1.bf16.msra.mxu0 %v393
    %481 = vmatprep.subr.bf16.mxu0 %v392
    %482 = vmatpush1.bf16.msra.mxu0 %v391
    %483 = vmatprep.subr.bf16.mxu0 %v390
    %484 = vmatpush1.bf16.msra.mxu0 %v389
    %485 = vmatprep.subr.bf16.mxu0 %v388
    %486 = vmatpush1.bf16.msra.mxu0 %v387
    %487 = vmatprep.subr.bf16.mxu0 %v386
    %488 = vmatpush1.bf16.msra.mxu0 %v385
    %489 = vmatprep.subr.bf16.mxu0 %v384
    %490 = vmatpush1.bf16.msra.mxu0 %v383
    %491 = vmatprep.subr.bf16.mxu0 %v382
    %492 = vmatpush1.bf16.msra.mxu0 %v381
    %493 = vmatprep.subr.bf16.mxu0 %v412
    %494 = vmatpush2.bf16.msra.mxu0 %v411
    %495 = vmatprep.subr.bf16.mxu0 %v410
    %496 = vmatpush2.bf16.msra.mxu0 %v409
    %497 = vmatprep.subr.bf16.mxu0 %v408
    %498 = vmatpush2.bf16.msra.mxu0 %v407
    %499 = vmatprep.subr.bf16.mxu0 %v406
    %500 = vmatpush2.bf16.msra.mxu0 %v405
    %501 = vmatprep.subr.bf16.mxu0 %v404
    %502 = vmatpush2.bf16.msra.mxu0 %v403
    %503 = vmatprep.subr.bf16.mxu0 %v402
    %504 = vmatpush2.bf16.msra.mxu0 %v401
    %505 = vmatprep.subr.bf16.mxu0 %v400
    %506 = vmatpush2.bf16.msra.mxu0 %v399
    %507 = vmatprep.subr.bf16.mxu0 %v398
    %508 = vmatpush2.bf16.msra.mxu0 %v397
    %509 = vmatprep.mubr.bf16.mxu0 %v184
    %510 = vmatmul.mubr.bf16.gmra.mxu0 %v183
    %v511 = vpop.f32.mrf.mxu0
    %v512 = vadd.f32 0.0, %v511
    %v513 = vpop.f32.mrf.mxu0
    %v514 = vadd.f32 0.0, %v513
    %v515 = vpop.f32.mrf.mxu0
    %v516 = vadd.f32 0.0, %v515
    %v517 = vpop.f32.mrf.mxu0
    %v518 = vadd.f32 0.0, %v517
    %519 = vmatprep.mubr.bf16.mxu0 %v187
    %520 = vmatmul.mubr.bf16.gmra.mxu0 %v186
    %v521 = vpop.f32.mrf.mxu0
    %v522 = vadd.f32 0.0, %v521
    %v523 = vpop.f32.mrf.mxu0
    %v524 = vadd.f32 0.0, %v523
    %v525 = vpop.f32.mrf.mxu0
    %v526 = vadd.f32 0.0, %v525
    %v527 = vpop.f32.mrf.mxu0
    %v528 = vadd.f32 0.0, %v527
    %529 = vdwg.mxu0
    %530 = vmatprep.subr.bf16.mxu0 %v428
    %531 = vmatpush1.bf16.msra.mxu0 %v427
    %532 = vmatprep.subr.bf16.mxu0 %v426
    %533 = vmatpush1.bf16.msra.mxu0 %v425
    %534 = vmatprep.subr.bf16.mxu0 %v424
    %535 = vmatpush1.bf16.msra.mxu0 %v423
    %536 = vmatprep.subr.bf16.mxu0 %v422
    %537 = vmatpush1.bf16.msra.mxu0 %v421
    %538 = vmatprep.subr.bf16.mxu0 %v420
    %539 = vmatpush1.bf16.msra.mxu0 %v419
    %540 = vmatprep.subr.bf16.mxu0 %v418
    %541 = vmatpush1.bf16.msra.mxu0 %v417
    %542 = vmatprep.subr.bf16.mxu0 %v416
    %543 = vmatpush1.bf16.msra.mxu0 %v415
    %544 = vmatprep.subr.bf16.mxu0 %v414
    %545 = vmatpush1.bf16.msra.mxu0 %v413
    %546 = vmatprep.subr.bf16.mxu0 0
    %547 = vmatpush2.bf16.msra.mxu0 0
    %548 = vmatprep.subr.bf16.mxu0 0
    %549 = vmatpush2.bf16.msra.mxu0 0
    %550 = vmatprep.subr.bf16.mxu0 0
    %551 = vmatpush2.bf16.msra.mxu0 0
    %552 = vmatprep.subr.bf16.mxu0 0
    %553 = vmatpush2.bf16.msra.mxu0 0
    %554 = vmatprep.subr.bf16.mxu0 0
    %555 = vmatpush2.bf16.msra.mxu0 0
    %556 = vmatprep.subr.bf16.mxu0 0
    %557 = vmatpush2.bf16.msra.mxu0 0
    %558 = vmatprep.subr.bf16.mxu0 0
    %559 = vmatpush2.bf16.msra.mxu0 0
    %560 = vmatprep.subr.bf16.mxu0 0
    %561 = vmatpush2.bf16.msra.mxu0 0
    %562 = vmatprep.mubr.bf16.mxu0 0
    %563 = vmatmul.mubr.bf16.gmra.mxu0 %v185
    %v564 = vpop.f32.mrf.mxu0
    %v565 = vadd.f32 %v512, %v564
    %v566 = vpop.f32.mrf.mxu0
    %v567 = vadd.f32 %v514, %v566
    %v568 = vpop.f32.mrf.mxu0
    %v569 = vadd.f32 %v516, %v568
    %v570 = vpop.f32.mrf.mxu0
    %v571 = vadd.f32 %v518, %v570
    %572 = vmatprep.mubr.bf16.mxu0 0
    %573 = vmatmul.mubr.bf16.gmra.mxu0 %v188
    %v574 = vpop.f32.mrf.mxu0
    %v575 = vadd.f32 %v522, %v574
    %v576 = vpop.f32.mrf.mxu0
    %v577 = vadd.f32 %v524, %v576
    %v578 = vpop.f32.mrf.mxu0
    %v579 = vadd.f32 %v526, %v578
    %v580 = vpop.f32.mrf.mxu0
    %v581 = vadd.f32 %v528, %v580
    %582 = vdwg.mxu0
    %v583 = vld [vmem:[%s7] sm:$0x1]
    %v585 = vlaneseq
    %v586 = vshrl.u32 %v585, 7
    %v587 = vsub.s32 0, %v586
    %v588 = vrot.slane %v583, %v587
    %v590 = vadd.f32 %v567, %v588
    %v591 = vadd.f32 %v571, %v588
    %v592 = vadd.f32 %v577, %v588
    %v593 = vadd.f32 %v581, %v588
    %v594 = vadd.f32 %v565, %v569
    %v595 = vadd.f32 %v594, %v575
    %v596 = vadd.f32 %v595, %v579
    %v597 = vrot.slane %v596, 4
    %v598 = vadd.f32 %v596, %v597
    %v599 = vrot.slane %v598, 2
    %v600 = vadd.f32 %v598, %v599
    %v601 = vrot.slane %v600, 1
    %v602 = vadd.f32 %v600, %v601
    %603 = vrot.lane.b32.xlu0 %v602, 8
    %v604 = vpop.permute.xlu0 %603
    %v605 = vadd.f32 %v602, %v604
    %606 = vrot.lane.b32.xlu0 %v605, 16
    %v607 = vpop.permute.xlu0 %606
    %v608 = vadd.f32 %v605, %v607
    %609 = vrot.lane.b32.xlu0 %v608, 32
    %v610 = vpop.permute.xlu0 %609
    %v611 = vadd.f32 %v608, %v610
    %612 = vrot.lane.b32.xlu0 %v611, 64
    %v613 = vpop.permute.xlu0 %612
    %v614 = vadd.f32 %v611, %v613
    %v615 = vmul.f32 %v614, 0.001953125
    %v616 = vlaneseq
    %v617 = vshrl.u32 %v616, 7
    %v618 = vsub.s32 0, %v617
    %v619 = vrot.slane %v615, %v618
    %v620 = vsub.f32 %v565, %v619
    %v621 = vsub.f32 %v569, %v619
    %v622 = vsub.f32 %v575, %v619
    %v623 = vsub.f32 %v579, %v619
    %v624 = vmul.f32 %v620, %v620
    %v625 = vmul.f32 %v621, %v621
    %v626 = vmul.f32 %v622, %v622
    %v627 = vmul.f32 %v623, %v623
    %v628 = vadd.f32 %v624, %v625
    %v629 = vadd.f32 %v628, %v626
    %v630 = vadd.f32 %v629, %v627
    %v631 = vrot.slane %v630, 4
    %v632 = vadd.f32 %v630, %v631
    %v633 = vrot.slane %v632, 2
    %v634 = vadd.f32 %v632, %v633
    %v635 = vrot.slane %v634, 1
    %v636 = vadd.f32 %v634, %v635
    %637 = vrot.lane.b32.xlu0 %v636, 8
    %v638 = vpop.permute.xlu0 %637
    %v639 = vadd.f32 %v636, %v638
    %640 = vrot.lane.b32.xlu0 %v639, 16
    %v641 = vpop.permute.xlu0 %640
    %v642 = vadd.f32 %v639, %v641
    %643 = vrot.lane.b32.xlu0 %v642, 32
    %v644 = vpop.permute.xlu0 %643
    %v645 = vadd.f32 %v642, %v644
    %646 = vrot.lane.b32.xlu0 %v645, 64
    %v647 = vpop.permute.xlu0 %646
    %v648 = vadd.f32 %v645, %v647
    %v649 = vmul.f32 %v648, 0.001953125
    %v650 = vld [vmem:[%s3] sm:$0x1]
    %v651 = vadd.f32 %v649, 1e-05
    %v652 = vrsqrt.pop %v651
    %v653 = vmul.f32 %v650, %v652
    %v655 = vlaneseq
    %v656 = vshrl.u32 %v655, 7
    %v657 = vsub.s32 0, %v656
    %v658 = vrot.slane %v653, %v657
    %v660 = vmul.f32 %v620, %v658
    %v661 = vmul.f32 %v621, %v658
    %v662 = vmul.f32 %v622, %v658
    %v663 = vmul.f32 %v623, %v658
    %v664 = vld [vmem:[%s4] sm:$0x1]
    %v666 = vlaneseq
    %v667 = vshrl.u32 %v666, 7
    %v668 = vsub.s32 0, %v667
    %v669 = vrot.slane %v664, %v668
    %v671 = vadd.f32 %v660, %v669
    %v672 = vadd.f32 %v661, %v669
    %v673 = vadd.f32 %v662, %v669
    %v674 = vadd.f32 %v663, %v669
    %v675 = vmax.f32 %v671, 0.0
    %v676 = vmax.f32 %v672, 0.0
    %v677 = vmax.f32 %v673, 0.0
    %v678 = vmax.f32 %v674, 0.0
    %v679 = vrot.slane %v675, 7
    %v680 = vrot.slane %v676, 7
    %v681 = vrot.slane %v677, 7
    %v682 = vrot.slane %v678, 7
    %v683 = vsel %vm161, %v681, %v682
    %v684 = vsel %vm161, %v680, %v681
    %v685 = vsel %vm161, %v679, %v680
    %v686 = vsel %vm161, %v682, %v679
    %v687 = vmul.f32 %v686, %v133
    %v688 = vmul.f32 %v685, %v134
    %v689 = vmul.f32 %v684, %v135
    %v690 = vmul.f32 %v683, %v136
    %v691 = vrot.slane %v675, 1
    %v692 = vrot.slane %v676, 1
    %v693 = vrot.slane %v677, 1
    %v694 = vrot.slane %v678, 1
    %v695 = vsel %vm174, %v693, %v694
    %v696 = vsel %vm174, %v692, %v693
    %v697 = vsel %vm174, %v691, %v692
    %v698 = vsel %vm174, %v694, %v691
    %v699 = vmul.f32 %v697, %v145
    %v700 = vmul.f32 %v696, %v146
    %v701 = vmul.f32 %v695, %v147
    %v702 = vmul.f32 %v698, %v148
    %v703 = vpack.c.bf16 %v688, %v687
    %v704 = vpack.c.bf16 %v676, %v675
    %v705 = vpack.c.bf16 %v700, %v699
    %v706 = vpack.c.bf16 %v690, %v689
    %v707 = vpack.c.bf16 %v678, %v677
    %v708 = vpack.c.bf16 %v702, %v701
    %v709 = vld [vmem:[#allocation7] sm:$0xf]
    %v710 = vld [vmem:[#allocation7 + $0x4] sm:$0xf]
    %v711 = vld [vmem:[#allocation7 + $0x8] sm:$0xf]
    %v712 = vld [vmem:[#allocation7 + $0xc] sm:$0xf]
    %v713 = vld [vmem:[#allocation7 + $0x10] sm:$0xf]
    %v714 = vld [vmem:[#allocation7 + $0x14] sm:$0xf]
    %v715 = vld [vmem:[#allocation7 + $0x18] sm:$0xf]
    %v716 = vld [vmem:[#allocation7 + $0x1c] sm:$0xf]
    %v717 = vld [vmem:[#allocation7 + $0x20] sm:$0xf]
    %v718 = vld [vmem:[#allocation7 + $0x24] sm:$0xf]
    %v719 = vld [vmem:[#allocation7 + $0x28] sm:$0xf]
    %v720 = vld [vmem:[#allocation7 + $0x2c] sm:$0xf]
    %v721 = vld [vmem:[#allocation7 + $0x30] sm:$0xf]
    %v722 = vld [vmem:[#allocation7 + $0x34] sm:$0xf]
    %v723 = vld [vmem:[#allocation7 + $0x38] sm:$0xf]
    %v724 = vld [vmem:[#allocation7 + $0x3c] sm:$0xf]
    %v725 = vld [vmem:[#allocation7 + $0x40] sm:$0xf]
    %v726 = vld [vmem:[#allocation7 + $0x44] sm:$0xf]
    %v727 = vld [vmem:[#allocation7 + $0x48] sm:$0xf]
    %v728 = vld [vmem:[#allocation7 + $0x4c] sm:$0xf]
    %v729 = vld [vmem:[#allocation7 + $0x50] sm:$0xf]
    %v730 = vld [vmem:[#allocation7 + $0x54] sm:$0xf]
    %v731 = vld [vmem:[#allocation7 + $0x58] sm:$0xf]
    %v732 = vld [vmem:[#allocation7 + $0x5c] sm:$0xf]
    %v733 = vld [vmem:[#allocation7 + $0x60] sm:$0xf]
    %v734 = vld [vmem:[#allocation7 + $0x64] sm:$0xf]
    %v735 = vld [vmem:[#allocation7 + $0x68] sm:$0xf]
    %v736 = vld [vmem:[#allocation7 + $0x6c] sm:$0xf]
    %v737 = vld [vmem:[#allocation7 + $0x70] sm:$0xf]
    %v738 = vld [vmem:[#allocation7 + $0x74] sm:$0xf]
    %v739 = vld [vmem:[#allocation7 + $0x78] sm:$0xf]
    %v740 = vld [vmem:[#allocation7 + $0x7c] sm:$0xf]
    %v741 = vld [vmem:[#allocation7 + $0x80] sm:$0xf]
    %v742 = vld [vmem:[#allocation7 + $0x84] sm:$0xf]
    %v743 = vld [vmem:[#allocation7 + $0x88] sm:$0xf]
    %v744 = vld [vmem:[#allocation7 + $0x8c] sm:$0xf]
    %v745 = vld [vmem:[#allocation7 + $0x90] sm:$0xf]
    %v746 = vld [vmem:[#allocation7 + $0x94] sm:$0xf]
    %v747 = vld [vmem:[#allocation7 + $0x98] sm:$0xf]
    %v748 = vld [vmem:[#allocation7 + $0x9c] sm:$0xf]
    %v749 = vld [vmem:[#allocation7 + $0xa0] sm:$0xf]
    %v750 = vld [vmem:[#allocation7 + $0xa4] sm:$0xf]
    %v751 = vld [vmem:[#allocation7 + $0xa8] sm:$0xf]
    %v752 = vld [vmem:[#allocation7 + $0xac] sm:$0xf]
    %v753 = vld [vmem:[#allocation7 + $0xb0] sm:$0xf]
    %v754 = vld [vmem:[#allocation7 + $0xb4] sm:$0xf]
    %v755 = vld [vmem:[#allocation7 + $0xb8] sm:$0xf]
    %v756 = vld [vmem:[#allocation7 + $0xbc] sm:$0xf]
    %v805 = vunpack.c.l.b16 %v709
    %v806 = vunpack.c.l.b16 %v710
    %v807 = vunpack.c.l.b16 %v711
    %v808 = vunpack.c.l.b16 %v712
    %v809 = vunpack.c.l.b16 %v713
    %v810 = vunpack.c.l.b16 %v714
    %v811 = vunpack.c.l.b16 %v715
    %v812 = vunpack.c.l.b16 %v716
    %v813 = vunpack.c.l.b16 %v717
    %v814 = vunpack.c.l.b16 %v718
    %v815 = vunpack.c.l.b16 %v719
    %v816 = vunpack.c.l.b16 %v720
    %v817 = vunpack.c.l.b16 %v721
    %v818 = vunpack.c.l.b16 %v722
    %v819 = vunpack.c.l.b16 %v723
    %v820 = vunpack.c.l.b16 %v724
    %v821 = vunpack.c.l.b16 %v725
    %v822 = vunpack.c.l.b16 %v726
    %v823 = vunpack.c.l.b16 %v727
    %v824 = vunpack.c.l.b16 %v728
    %v825 = vunpack.c.l.b16 %v729
    %v826 = vunpack.c.l.b16 %v730
    %v827 = vunpack.c.l.b16 %v731
    %v828 = vunpack.c.l.b16 %v732
    %v829 = vunpack.c.l.b16 %v733
    %v830 = vunpack.c.l.b16 %v734
    %v831 = vunpack.c.l.b16 %v735
    %v832 = vunpack.c.l.b16 %v736
    %v833 = vunpack.c.l.b16 %v737
    %v834 = vunpack.c.l.b16 %v738
    %v835 = vunpack.c.l.b16 %v739
    %v836 = vunpack.c.l.b16 %v740
    %v837 = vunpack.c.l.b16 %v741
    %v838 = vunpack.c.l.b16 %v742
    %v839 = vunpack.c.l.b16 %v743
    %v840 = vunpack.c.l.b16 %v744
    %v841 = vunpack.c.l.b16 %v745
    %v842 = vunpack.c.l.b16 %v746
    %v843 = vunpack.c.l.b16 %v747
    %v844 = vunpack.c.l.b16 %v748
    %v845 = vunpack.c.l.b16 %v749
    %v846 = vunpack.c.l.b16 %v750
    %v847 = vunpack.c.l.b16 %v751
    %v848 = vunpack.c.l.b16 %v752
    %v849 = vunpack.c.l.b16 %v753
    %v850 = vunpack.c.l.b16 %v754
    %v851 = vunpack.c.l.b16 %v755
    %v852 = vunpack.c.l.b16 %v756
    %v853 = vpack.c.b16 %v806, %v805
    %v854 = vpack.c.b16 %v808, %v807
    %v855 = vpack.c.b16 %v810, %v809
    %v856 = vpack.c.b16 %v812, %v811
    %v857 = vpack.c.b16 %v814, %v813
    %v858 = vpack.c.b16 %v816, %v815
    %v859 = vpack.c.b16 %v818, %v817
    %v860 = vpack.c.b16 %v820, %v819
    %v861 = vpack.c.b16 %v822, %v821
    %v862 = vpack.c.b16 %v824, %v823
    %v863 = vpack.c.b16 %v826, %v825
    %v864 = vpack.c.b16 %v828, %v827
    %v865 = vpack.c.b16 %v830, %v829
    %v866 = vpack.c.b16 %v832, %v831
    %v867 = vpack.c.b16 %v834, %v833
    %v868 = vpack.c.b16 %v836, %v835
    %v869 = vpack.c.b16 %v838, %v837
    %v870 = vpack.c.b16 %v840, %v839
    %v871 = vpack.c.b16 %v842, %v841
    %v872 = vpack.c.b16 %v844, %v843
    %v873 = vpack.c.b16 %v846, %v845
    %v874 = vpack.c.b16 %v848, %v847
    %v875 = vpack.c.b16 %v850, %v849
    %v876 = vpack.c.b16 %v852, %v851
    %901 = vmatprep.subr.bf16.mxu0 0
    %902 = vmatpush1.bf16.msra.mxu0 %v860
    %903 = vmatprep.subr.bf16.mxu0 0
    %904 = vmatpush1.bf16.msra.mxu0 %v859
    %905 = vmatprep.subr.bf16.mxu0 0
    %906 = vmatpush1.bf16.msra.mxu0 %v858
    %907 = vmatprep.subr.bf16.mxu0 0
    %908 = vmatpush1.bf16.msra.mxu0 %v857
    %909 = vmatprep.subr.bf16.mxu0 0
    %910 = vmatpush1.bf16.msra.mxu0 %v856
    %911 = vmatprep.subr.bf16.mxu0 0
    %912 = vmatpush1.bf16.msra.mxu0 %v855
    %913 = vmatprep.subr.bf16.mxu0 0
    %914 = vmatpush1.bf16.msra.mxu0 %v854
    %915 = vmatprep.subr.bf16.mxu0 0
    %916 = vmatpush1.bf16.msra.mxu0 %v853
    %917 = vmatprep.subr.bf16.mxu0 0
    %918 = vmatpush2.bf16.msra.mxu0 %v868
    %919 = vmatprep.subr.bf16.mxu0 0
    %920 = vmatpush2.bf16.msra.mxu0 %v867
    %921 = vmatprep.subr.bf16.mxu0 0
    %922 = vmatpush2.bf16.msra.mxu0 %v866
    %923 = vmatprep.subr.bf16.mxu0 0
    %924 = vmatpush2.bf16.msra.mxu0 %v865
    %925 = vmatprep.subr.bf16.mxu0 0
    %926 = vmatpush2.bf16.msra.mxu0 %v864
    %927 = vmatprep.subr.bf16.mxu0 0
    %928 = vmatpush2.bf16.msra.mxu0 %v863
    %929 = vmatprep.subr.bf16.mxu0 0
    %930 = vmatpush2.bf16.msra.mxu0 %v862
    %931 = vmatprep.subr.bf16.mxu0 0
    %932 = vmatpush2.bf16.msra.mxu0 %v861
    %933 = vmatprep.mubr.bf16.mxu0 %v704
    %934 = vmatmul.mubr.bf16.gmra.mxu0 %v703
    %v935 = vpop.f32.mrf.mxu0
    %v936 = vadd.f32 0.0, %v935
    %v937 = vpop.f32.mrf.mxu0
    %v938 = vpop.f32.mrf.mxu0
    %v939 = vadd.f32 0.0, %v938
    %v940 = vpop.f32.mrf.mxu0
    %941 = vmatprep.mubr.bf16.mxu0 %v707
    %942 = vmatmul.mubr.bf16.gmra.mxu0 %v706
    %v943 = vpop.f32.mrf.mxu0
    %v944 = vadd.f32 0.0, %v943
    %v945 = vpop.f32.mrf.mxu0
    %v946 = vpop.f32.mrf.mxu0
    %v947 = vadd.f32 0.0, %v946
    %v948 = vpop.f32.mrf.mxu0
    %949 = vdwg.mxu0
    %950 = vmatprep.subr.bf16.mxu0 0
    %951 = vmatpush1.bf16.msra.mxu0 %v876
    %952 = vmatprep.subr.bf16.mxu0 0
    %953 = vmatpush1.bf16.msra.mxu0 %v875
    %954 = vmatprep.subr.bf16.mxu0 0
    %955 = vmatpush1.bf16.msra.mxu0 %v874
    %956 = vmatprep.subr.bf16.mxu0 0
    %957 = vmatpush1.bf16.msra.mxu0 %v873
    %958 = vmatprep.subr.bf16.mxu0 0
    %959 = vmatpush1.bf16.msra.mxu0 %v872
    %960 = vmatprep.subr.bf16.mxu0 0
    %961 = vmatpush1.bf16.msra.mxu0 %v871
    %962 = vmatprep.subr.bf16.mxu0 0
    %963 = vmatpush1.bf16.msra.mxu0 %v870
    %964 = vmatprep.subr.bf16.mxu0 0
    %965 = vmatpush1.bf16.msra.mxu0 %v869
    %966 = vmatprep.subr.bf16.mxu0 0
    %967 = vmatpush2.bf16.msra.mxu0 0
    %968 = vmatprep.subr.bf16.mxu0 0
    %969 = vmatpush2.bf16.msra.mxu0 0
    %970 = vmatprep.subr.bf16.mxu0 0
    %971 = vmatpush2.bf16.msra.mxu0 0
    %972 = vmatprep.subr.bf16.mxu0 0
    %973 = vmatpush2.bf16.msra.mxu0 0
    %974 = vmatprep.subr.bf16.mxu0 0
    %975 = vmatpush2.bf16.msra.mxu0 0
    %976 = vmatprep.subr.bf16.mxu0 0
    %977 = vmatpush2.bf16.msra.mxu0 0
    %978 = vmatprep.subr.bf16.mxu0 0
    %979 = vmatpush2.bf16.msra.mxu0 0
    %980 = vmatprep.subr.bf16.mxu0 0
    %981 = vmatpush2.bf16.msra.mxu0 0
    %982 = vmatprep.mubr.bf16.mxu0 0
    %983 = vmatmul.mubr.bf16.gmra.mxu0 %v705
    %v984 = vpop.f32.mrf.mxu0
    %v985 = vadd.f32 %v936, %v984
    %v986 = vpop.f32.mrf.mxu0
    %v987 = vpop.f32.mrf.mxu0
    %v988 = vadd.f32 %v939, %v987
    %v989 = vpop.f32.mrf.mxu0
    %990 = vmatprep.mubr.bf16.mxu0 0
    %991 = vmatmul.mubr.bf16.gmra.mxu0 %v708
    %v992 = vpop.f32.mrf.mxu0
    %v993 = vadd.f32 %v944, %v992
    %v994 = vpop.f32.mrf.mxu0
    %v995 = vpop.f32.mrf.mxu0
    %v996 = vadd.f32 %v947, %v995
    %v997 = vpop.f32.mrf.mxu0
    %998 = vdwg.mxu0
    %v999 = vadd.f32 %v985, %v988
    %v1000 = vadd.f32 %v999, %v993
    %v1001 = vadd.f32 %v1000, %v996
    %v1002 = vrot.slane %v1001, 4
    %v1003 = vadd.f32 %v1001, %v1002
    %v1004 = vrot.slane %v1003, 2
    %v1005 = vadd.f32 %v1003, %v1004
    %v1006 = vrot.slane %v1005, 1
    %v1007 = vadd.f32 %v1005, %v1006
    %1008 = vrot.lane.b32.xlu0 %v1007, 8
    %v1009 = vpop.permute.xlu0 %1008
    %v1010 = vadd.f32 %v1007, %v1009
    %1011 = vrot.lane.b32.xlu0 %v1010, 16
    %v1012 = vpop.permute.xlu0 %1011
    %v1013 = vadd.f32 %v1010, %v1012
    %1014 = vrot.lane.b32.xlu0 %v1013, 32
    %v1015 = vpop.permute.xlu0 %1014
    %v1016 = vadd.f32 %v1013, %v1015
    %1017 = vrot.lane.b32.xlu0 %v1016, 64
    %v1018 = vpop.permute.xlu0 %1017
    %v1019 = vadd.f32 %v1016, %v1018
    %v1020 = vmul.f32 %v1019, 0.001953125
    %v1021 = vlaneseq
    %v1022 = vshrl.u32 %v1021, 7
    %v1023 = vsub.s32 0, %v1022
    %v1024 = vrot.slane %v1020, %v1023
    %v1025 = vsub.f32 %v985, %v1024
    %v1026 = vsub.f32 %v988, %v1024
    %v1027 = vsub.f32 %v993, %v1024
    %v1028 = vsub.f32 %v996, %v1024
    %v1029 = vmul.f32 %v1025, %v1025
    %v1030 = vmul.f32 %v1026, %v1026
    %v1031 = vmul.f32 %v1027, %v1027
    %v1032 = vmul.f32 %v1028, %v1028
    %v1033 = vadd.f32 %v1029, %v1030
    %v1034 = vadd.f32 %v1033, %v1031
    %v1035 = vadd.f32 %v1034, %v1032
    %v1036 = vrot.slane %v1035, 4
    %v1037 = vadd.f32 %v1035, %v1036
    %v1038 = vrot.slane %v1037, 2
    %v1039 = vadd.f32 %v1037, %v1038
    %v1040 = vrot.slane %v1039, 1
    %v1041 = vadd.f32 %v1039, %v1040
    %1042 = vrot.lane.b32.xlu0 %v1041, 8
    %v1043 = vpop.permute.xlu0 %1042
    %v1044 = vadd.f32 %v1041, %v1043
    %1045 = vrot.lane.b32.xlu0 %v1044, 16
    %v1046 = vpop.permute.xlu0 %1045
    %v1047 = vadd.f32 %v1044, %v1046
    %1048 = vrot.lane.b32.xlu0 %v1047, 32
    %v1049 = vpop.permute.xlu0 %1048
    %v1050 = vadd.f32 %v1047, %v1049
    %1051 = vrot.lane.b32.xlu0 %v1050, 64
    %v1052 = vpop.permute.xlu0 %1051
    %v1053 = vadd.f32 %v1050, %v1052
    %v1054 = vmul.f32 %v1053, 0.001953125
    %v1055 = vld [vmem:[%s5] sm:$0x1]
    %v1056 = vadd.f32 %v1054, 1e-05
    %v1057 = vrsqrt.pop %v1056
    %v1058 = vmul.f32 %v1055, %v1057
    %v1060 = vlaneseq
    %v1061 = vshrl.u32 %v1060, 7
    %v1062 = vsub.s32 0, %v1061
    %v1063 = vrot.slane %v1058, %v1062
    %v1065 = vmul.f32 %v1025, %v1063
    %v1066 = vmul.f32 %v1026, %v1063
    %v1067 = vmul.f32 %v1027, %v1063
    %v1068 = vmul.f32 %v1028, %v1063
    %v1069 = vld [vmem:[%s6] sm:$0x1]
    %v1071 = vlaneseq
    %v1072 = vshrl.u32 %v1071, 7
    %v1073 = vsub.s32 0, %v1072
    %v1074 = vrot.slane %v1069, %v1073
    %v1076 = vadd.f32 %v1065, %v1074
    %v1077 = vadd.f32 %v1066, %v1074
    %v1078 = vadd.f32 %v1067, %v1074
    %v1079 = vadd.f32 %v1068, %v1074
    %v1080 = vadd.f32 %v1076, %v590
    %v1081 = vadd.f32 %v1077, %v591
    %v1082 = vadd.f32 %v1078, %v592
    %v1083 = vadd.f32 %v1079, %v593
    %v1084 = vmax.f32 %v1080, 0.0
    %v1085 = vmax.f32 %v1081, 0.0
    %v1086 = vmax.f32 %v1082, 0.0
    %v1087 = vmax.f32 %v1083, 0.0
    %1088 = vst [vmem:[#allocation8] sm:$0xff] %v1084
    %1089 = vst [vmem:[#allocation8 + $0x8] sm:$0xff] %v1085
    %1090 = vst [vmem:[#allocation8 + $0x10] sm:$0xff] %v1086
    %1091 = vst [vmem:[#allocation8 + $0x18] sm:$0xff] %v1087
    // Predicated region
    $region46: #{tpu_custom_call.1} parent=1 // pred_check
      _
    $region47: #{tpu_custom_call.1} parent=1 // pred_check_branch
      %1093 = sbr.rel (0) target = $region49
    $region48: #{tpu_custom_call.1} parent=1 // pred_region
      %s1095 = ssub.s32 512, 512
      %1096 = vsyncadd [#allocation4], %s1095
      %s1097 = sshll.u32 [#allocation8], 4
      %s1098 = int_to_ptr.vmem [resolvable:$true] %s1097
      %1103 = dma.vmem_to_hbm [thread:$0]  %s1098, 512, %s8, [#allocation4], 128, 128, 8
    $region49: #{tpu_custom_call.1} parent=1 // pred_fallthru
      _
    // Predicated region
    $region50: #{tpu_custom_call.1} parent=1 // pred_check
      _
    $region51: #{tpu_custom_call.1} parent=1 // pred_check_branch
      %1105 = sbr.rel (0) target = $region53
    $region52: #{tpu_custom_call.1} parent=1 // pred_region
      %1106 = dma.done [#allocation4], 512
    $region53: #{tpu_custom_call.1} parent=1 // pred_fallthru
      _
    %1107 = vsyncpa [#allocation3], 1
    %1108 = vsyncpa [#allocation6], 1
    %1109 = vsyncpa [#allocation4], 1

</llo_original>
